<compile_context>
chip_gen: v6e
topology: v6e:2x2x1
jax: 0.10.0
libtpu: 0.0.40
codegen_flags: <defaults>
</compile_context>

<pallas_src>
import math

import jax
import jax.numpy as jnp
from jax.experimental import pallas as pl
from jax.experimental.pallas import tpu as pltpu

d_model = 32
n_classes = 2

# Rows of tokens per grid step.
_TILE_M_MAX = 2048


def _round_up(n, m):
    return ((n + m - 1) // m) * m


def _linear_kernel(x_ref, wt_ref, b_ref, o_ref):
    # x_ref:  (TILE_M, d_model)   streamed activation tile
    # wt_ref: (d_model, n_out)    pre-transposed weight (VMEM-resident)
    # b_ref:  (1, n_out)          bias (VMEM-resident)
    # o_ref:  (TILE_M, n_out)
    y = jax.lax.dot_general(
        x_ref[...], wt_ref[...],
        dimension_numbers=(((1,), (0,)), ((), ())),   # (M,K)@(K,N): MXU-native
        preferred_element_type=jnp.float32,           # f32 accumulation
    )
    y = y + b_ref[...]                                # single broadcast per tile
    o_ref[...] = y.astype(o_ref.dtype)


def get_logits_forward(x, w, b, *, tile_m_max=_TILE_M_MAX):
    """nn.Linear semantics: y = x @ w.T + b.

    x: (..., d_model), w: (n_out, d_model) (PyTorch layout), b: (n_out,).
    Returns (..., n_out) in x.dtype.
    """
    *lead, D = x.shape
    n_out = w.shape[0]
    M = math.prod(lead) if lead else 1
    x2d = x.reshape(M, D)

    # Token tile: multiple of 8 sublanes, capped at tile_m_max.
    tile_m = min(tile_m_max, _round_up(M, 8))
    m_pad = _round_up(M, tile_m)
    padded = m_pad != M
    if padded:
        x2d = jnp.pad(x2d, ((0, m_pad - M), (0, 0)))

    wt = jnp.asarray(w).T                 # (d_model, n_out), one-time wrapper op
    b2d = jnp.asarray(b).reshape(1, n_out)

    grid = (m_pad // tile_m,)

    out2d = pl.pallas_call(
        _linear_kernel,
        out_shape=jax.ShapeDtypeStruct((m_pad, n_out), x.dtype),
        grid_spec=pltpu.PrefetchScalarGridSpec(
            num_scalar_prefetch=0,
            grid=grid,
            in_specs=[
                pl.BlockSpec((tile_m, D), lambda i: (i, 0)),   # streamed x tiles
                pl.BlockSpec((D, n_out), lambda i: (0, 0)),    # resident weight
                pl.BlockSpec((1, n_out), lambda i: (0, 0)),    # resident bias
            ],
            out_specs=pl.BlockSpec((tile_m, n_out), lambda i: (i, 0)),
        ),
        compiler_params=pltpu.CompilerParams(
            # Independent row tiles -> shard across TensorCores (v7x megacore).
            dimension_semantics=("parallel",),
        ),
    )(x2d, wt, b2d)

    if padded:
        out2d = out2d[:M]
    return out2d.reshape(*lead, n_out)


if __name__ == "__main__":
    key = jax.random.PRNGKey(0)
    k_x, k_w, k_b = jax.random.split(key, 3)

    # nn.Linear(d_model, 2)-shaped parameters (PyTorch layout: W is (out, in)).
    W = jax.random.normal(k_w, (n_classes, d_model), jnp.float32) / jnp.sqrt(d_model)
    b = jax.random.normal(k_b, (n_classes,), jnp.float32) * 0.1

    # Example input: batch=2, seq(pos)=8, d_model=32.
    x = jax.random.normal(k_x, (2, 8, d_model), jnp.float32)

    y = get_logits_forward(x, W, b)
    y = jax.block_until_ready(y)

    # Pure-JAX reference for nn.Linear semantics.
    y_ref = jnp.einsum("bpd,cd->bpc", x, W) + b
    assert y.shape == (2, 8, n_classes)
    assert jnp.allclose(y, y_ref, atol=1e-5, rtol=1e-5)

    print("KERNEL_OK")
</pallas_src>

<mosaic_0001>
module attributes {stable_mosaic.version = 11 : i64} {
  func.func @_linear_kernel(%arg0: i32, %arg1: memref<16x32xf32, #tpu.memory_space<vmem>>, %arg2: memref<32x2xf32, #tpu.memory_space<vmem>>, %arg3: memref<1x2xf32, #tpu.memory_space<vmem>>, %arg4: memref<16x2xf32, #tpu.memory_space<vmem>>) attributes {dimension_semantics = [#tpu.dimension_semantics<parallel>], iteration_bounds = array<i64: 1>, scalar_prefetch = 0 : i64, scratch_operands = 0 : i64, tpu.core_type = #tpu.core_type<tc>, window_params = [{transform_indices = @transform_0, window_bounds = array<i64: 16, 32>}, {pipeline_mode = #tpu.pipeline_mode<synchronous>, transform_indices = @transform_1, window_bounds = array<i64: 32, 2>}, {pipeline_mode = #tpu.pipeline_mode<synchronous>, transform_indices = @transform_2, window_bounds = array<i64: 1, 2>}, {transform_indices = @transform_3, window_bounds = array<i64: 16, 2>}]} {
    %c0 = arith.constant 0 : index
    %c0_0 = arith.constant 0 : index
    %0 = vector.load %arg1[%c0, %c0_0] : memref<16x32xf32, #tpu.memory_space<vmem>>, vector<16x32xf32>
    %c0_1 = arith.constant 0 : index
    %c0_2 = arith.constant 0 : index
    %1 = vector.load %arg2[%c0_1, %c0_2] : memref<32x2xf32, #tpu.memory_space<vmem>>, vector<32x2xf32>
    %cst = arith.constant dense<0.000000e+00> : vector<16x2xf32>
    %2 = tpu.matmul %0, %1, %cst {dimension_numbers = #tpu.dot_dimension_numbers<[1], [0], [0], [1], [0, 0, 1, 1], [], []>} : vector<16x32xf32>, vector<32x2xf32>, vector<16x2xf32> -> vector<16x2xf32>
    %c0_3 = arith.constant 0 : index
    %c0_4 = arith.constant 0 : index
    %3 = vector.load %arg3[%c0_3, %c0_4] : memref<1x2xf32, #tpu.memory_space<vmem>>, vector<1x2xf32>
    %4 = vector.broadcast %3 : vector<1x2xf32> to vector<16x2xf32>
    %5 = arith.addf %2, %4 : vector<16x2xf32>
    %c0_5 = arith.constant 0 : index
    %c0_6 = arith.constant 0 : index
    %6 = vector.load %arg4[%c0_5, %c0_6] : memref<16x2xf32, #tpu.memory_space<vmem>>, vector<16x2xf32>
    tpu.vector_store %arg4[%c0_5, %c0_6], %5 {strides = array<i32>} : memref<16x2xf32, #tpu.memory_space<vmem>>, vector<16x2xf32>,
    return
  }
  func.func @transform_0(%arg0: i32) -> (i32, i32) {
    %c0_i32 = arith.constant 0 : i32
    %c0_i32_0 = arith.constant 0 : i32
    return %arg0, %c0_i32 : i32, i32
  }
  func.func @transform_1(%arg0: i32) -> (i32, i32) {
    %c0_i32 = arith.constant 0 : i32
    %c0_i32_0 = arith.constant 0 : i32
    %c0_i32_1 = arith.constant 0 : i32
    return %c0_i32, %c0_i32_0 : i32, i32
  }
  func.func @transform_2(%arg0: i32) -> (i32, i32) {
    %c0_i32 = arith.constant 0 : i32
    %c0_i32_0 = arith.constant 0 : i32
    %c0_i32_1 = arith.constant 0 : i32
    return %c0_i32, %c0_i32_0 : i32, i32
  }
  func.func @transform_3(%arg0: i32) -> (i32, i32) {
    %c0_i32 = arith.constant 0 : i32
    %c0_i32_0 = arith.constant 0 : i32
    return %arg0, %c0_i32 : i32, i32
  }
}

</mosaic_0001>

<llo_original>
// kernel: tpu_custom_call.1
$region0: #{tpu_custom_call.1}
  #allocation0 [shape = 'u32[]', space=smem, size = 0x4, offset = 0x4, fixed_abs, tag = 'smem constant byte address 0x4 - core index']
  #allocation1 [shape = 'u32[144,128]{1,0:T(1,128)}', space=vmem, size = 0x12000, scoped, tag = 'internal scratch']
  %s0 = inlined_call_operand.vmem [shape: f32[16,32], index: 0, kind: input, shape index: {}]
  %s1 = inlined_call_operand.vmem [shape: f32[32,2], index: 1, kind: input, shape index: {}]
  %s2 = inlined_call_operand.vmem [shape: f32[1,2], index: 2, kind: input, shape index: {}]
  %s3 = inlined_call_operand.vmem [shape: f32[16,2], index: 3, kind: output, shape index: {}]
  %s4 = sld [smem:[#allocation0]]
  $region22: #{tpu_custom_call.1} parent=0
    _
  %s6 = ssub.s32 1, %s4
  %s7 = scalar_select 0, %s6, %s4
  // Predicated region
  $region2: #{tpu_custom_call.1} parent=0 // pred_check
    _
  $region3: #{tpu_custom_call.1} parent=0 // pred_check_branch
    %9 = sbr.rel (0) target = $region5
  $region4: #{tpu_custom_call.1} parent=0 // pred_region
    _
  $region5: #{tpu_custom_call.1} parent=0 // pred_fallthru
    _
  // Predicated region
  $region6: #{tpu_custom_call.1} parent=0 // pred_check
    _
  $region7: #{tpu_custom_call.1} parent=0 // pred_check_branch
    %11 = sbr.rel (0) target = $region9
  $region8: #{tpu_custom_call.1} parent=0 // pred_region
    _
  $region9: #{tpu_custom_call.1} parent=0 // pred_fallthru
    _
  // Predicated region
  $region10: #{tpu_custom_call.1} parent=0 // pred_check
    _
  $region11: #{tpu_custom_call.1} parent=0 // pred_check_branch
    %13 = sbr.rel (0) target = $region13
  $region12: #{tpu_custom_call.1} parent=0 // pred_region
    _
  $region13: #{tpu_custom_call.1} parent=0 // pred_fallthru
    _
  %v14 = vld [vmem:[%s0] sm:$0xff]
  %v15 = vld [vmem:[%s0 + $0x8] sm:$0xff]
  %v16 = vld [vmem:[%s1] sm:$0xff]
  %v17 = vld [vmem:[%s1 + $0x8] sm:$0xff]
  %v18 = vld [vmem:[%s1 + $0x10] sm:$0xff]
  %v19 = vld [vmem:[%s1 + $0x18] sm:$0xff]
  %v20 = vld [vmem:[%s2] sm:$0x1]
  %v22 = vlaneseq
  %v23 = vshrl.u32 %v22, 7
  %v24 = vsub.s32 0, %v23
  %v25 = vrot.slane %v20, %v24
  %vm27 = vcmask 261120
  %v29 = vsel %vm27, %v14, 0
  %v32 = vsel %vm27, %v15, 0
  %34 = vmatprep.subr.mxu0 0.0
  %35 = vmatpush1.msra.mxu0 0.0
  %36 = vmatprep.subr.mxu0 0.0
  %37 = vmatpush1.msra.mxu0 0.0
  %38 = vmatprep.subr.mxu0 0.0
  %39 = vmatpush1.msra.mxu0 0.0
  %40 = vmatprep.subr.mxu0 0.0
  %41 = vmatpush1.msra.mxu0 0.0
  %42 = vmatprep.subr.mxu0 0.0
  %43 = vmatpush1.msra.mxu0 0.0
  %44 = vmatprep.subr.mxu0 0.0
  %45 = vmatpush1.msra.mxu0 0.0
  %46 = vmatprep.subr.mxu0 0.0
  %47 = vmatpush1.msra.mxu0 0.0
  %48 = vmatprep.subr.mxu0 0.0
  %49 = vmatpush1.msra.mxu0 0.0
  %50 = vmatprep.subr.mxu0 0.0
  %51 = vmatpush1.msra.mxu0 0.0
  %52 = vmatprep.subr.mxu0 0.0
  %53 = vmatpush1.msra.mxu0 0.0
  %54 = vmatprep.subr.mxu0 0.0
  %55 = vmatpush1.msra.mxu0 0.0
  %56 = vmatprep.subr.mxu0 0.0
  %57 = vmatpush1.msra.mxu0 0.0
  %58 = vmatprep.subr.mxu0 0.0
  %59 = vmatpush1.msra.mxu0 %v19
  %60 = vmatprep.subr.mxu0 0.0
  %61 = vmatpush1.msra.mxu0 %v18
  %62 = vmatprep.subr.mxu0 0.0
  %63 = vmatpush1.msra.mxu0 %v17
  %64 = vmatprep.subr.mxu0 0.0
  %65 = vmatpush1.msra.mxu0 %v16
  %66 = vmatprep.subr.mxu0 0.0
  %67 = vmatpush2.msra.mxu0 0.0
  %68 = vmatprep.subr.mxu0 0.0
  %69 = vmatpush2.msra.mxu0 0.0
  %70 = vmatprep.subr.mxu0 0.0
  %71 = vmatpush2.msra.mxu0 0.0
  %72 = vmatprep.subr.mxu0 0.0
  %73 = vmatpush2.msra.mxu0 0.0
  %74 = vmatprep.subr.mxu0 0.0
  %75 = vmatpush2.msra.mxu0 0.0
  %76 = vmatprep.subr.mxu0 0.0
  %77 = vmatpush2.msra.mxu0 0.0
  %78 = vmatprep.subr.mxu0 0.0
  %79 = vmatpush2.msra.mxu0 0.0
  %80 = vmatprep.subr.mxu0 0.0
  %81 = vmatpush2.msra.mxu0 0.0
  %82 = vmatprep.subr.mxu0 0.0
  %83 = vmatpush2.msra.mxu0 0.0
  %84 = vmatprep.subr.mxu0 0.0
  %85 = vmatpush2.msra.mxu0 0.0
  %86 = vmatprep.subr.mxu0 0.0
  %87 = vmatpush2.msra.mxu0 0.0
  %88 = vmatprep.subr.mxu0 0.0
  %89 = vmatpush2.msra.mxu0 0.0
  %90 = vmatprep.subr.mxu0 0.0
  %91 = vmatpush2.msra.mxu0 0.0
  %92 = vmatprep.subr.mxu0 0.0
  %93 = vmatpush2.msra.mxu0 0.0
  %94 = vmatprep.subr.mxu0 0.0
  %95 = vmatpush2.msra.mxu0 0.0
  %96 = vmatprep.subr.mxu0 0.0
  %97 = vmatpush2.msra.mxu0 0.0
  %98 = vmatprep.mubr.f32.mxu0 0.0
  %99 = vmatmul.mubr.f32.gmra.mxu0 %v29
  %v100 = vpop.f32.mrf.mxu0
  %v101 = vadd.f32 %v25, %v100
  %v102 = vpop.f32.mrf.mxu0
  %103 = vmatprep.mubr.f32.mxu0 0.0
  %104 = vmatmul.mubr.f32.gmra.mxu0 %v32
  %v105 = vpop.f32.mrf.mxu0
  %v106 = vadd.f32 %v25, %v105
  %v107 = vpop.f32.mrf.mxu0
  %108 = vdwg.mxu0
  %vm109 = vcmask 15360
  %110 = vst.msk [vmem:[%s3] sm:$0xff] %vm109, %v101
  %111 = vst.msk [vmem:[%s3 + $0x8] sm:$0xff] %vm109, %v106
  // Predicated region
  $region14: #{tpu_custom_call.1} parent=0 // pred_check
    _
  $region15: #{tpu_custom_call.1} parent=0 // pred_check_branch
    %113 = sbr.rel (0) target = $region17
  $region16: #{tpu_custom_call.1} parent=0 // pred_region
    _
  $region17: #{tpu_custom_call.1} parent=0 // pred_fallthru
    _
  // Predicated region
  $region18: #{tpu_custom_call.1} parent=0 // pred_check
    _
  $region19: #{tpu_custom_call.1} parent=0 // pred_check_branch
    %115 = sbr.rel (0) target = $region21
  $region20: #{tpu_custom_call.1} parent=0 // pred_region
    _
  $region21: #{tpu_custom_call.1} parent=0 // pred_fallthru
    _

</llo_original>
